<compile_context>
chip_gen: v7x
topology: tpu7x:2x2x1
jax: 0.10.0
libtpu: 0.0.40
codegen_flags: <defaults>
</compile_context>

<pallas_src>
import math
from functools import partial

import jax
import jax.numpy as jnp
from jax.experimental import pallas as pl
from jax.experimental.pallas import tpu as pltpu


def _cdiv(a, b):
    return -(-a // b)


def _round_up(x, m):
    return _cdiv(x, m) * m


def _sublane_pad(rows, itemsize):
    # Physical sublane padding: 8 rows for 32-bit, 16 for 16-bit, 32 for 8-bit.
    return _round_up(rows, 8 * max(1, 4 // int(itemsize)))


def _cbn_kernel(shape_ref,          # (tb, F)            f32
                samp_ref,           # (tb, rep_cols)     native dtype, lane-dense
                w_ref,              # (F, 2*unit_cols)   folded [gamma | beta] weights
                b_ref,              # (1, 2*unit_cols)   folded biases
                out_ref,            # (tb, rep_cols)     native dtype
                *, unit_cols, reps):
    # Tiny per-step MXU matmul: affine params with running stats already folded
    # in (gamma_eff = gamma*inv_std, beta_eff = beta - gamma_eff*mean).
    affine = jnp.dot(shape_ref[...], w_ref[...],
                     preferred_element_type=jnp.float32) + b_ref[...]
    gamma = affine[:, :unit_cols]                       # (tb, unit_cols) f32
    beta = affine[:, unit_cols:]                        # (tb, unit_cols) f32
    out_dtype = out_ref.dtype

    # Steady state: one 128-lane-aligned fused scale+shift per unit column
    # block.  Narrow temporaries (no full-tile-width f32 intermediates), stores
    # are unmasked lane-dense vst.
    for r in range(reps):
        c = r * unit_cols
        s = samp_ref[:, pl.ds(c, unit_cols)].astype(jnp.float32)
        out_ref[:, pl.ds(c, unit_cols)] = (gamma * s + beta).astype(out_dtype)


def _choose_batch_tile(B):
    # Block rule: second-minor dim must be a multiple of 8 or equal the full B.
    if B % 8 != 0:
        return B
    return min(B, 32)


def _choose_n_tiling(N, F, tb_phys, itemsize, target_tile_bytes=1 << 20):
    """Lane-dense flattened tiling of the (N, F) sample axis.

    Returns (unit_cols, reps, grid_n) where the tile width is
    rep_cols = reps * unit_cols, unit_cols = lcm(F, 128), and the tile byte
    size (sublane-padded) is ~target_tile_bytes (HBM-roofline plateau)."""
    unit = 128 // math.gcd(F, 128)          # rows per 128-lane-aligned unit
    unit_cols = unit * F                    # multiple of 128
    n_units = _cdiv(N, unit)
    units_budget = max(1, target_tile_bytes // (tb_phys * unit_cols * itemsize))
    grid_n = _cdiv(n_units, units_budget)
    reps = _cdiv(n_units, grid_n)           # units per tile (minimal boundary waste)
    return unit_cols, reps, grid_n


def batched_cbn_forward(shape_embedding, sample_embeddings,
                        w_beta, b_beta, w_gamma, b_gamma,
                        running_mean, running_var, eps=1e-5):
    """shape_embedding: (B, F); sample_embeddings: (B, N, F); W*: (F_out, F_in)."""
    B, F = shape_embedding.shape
    _, N, _ = sample_embeddings.shape

    # Stream samples / write output in the native dtype (no forced f32 upcast).
    samp_dtype = sample_embeddings.dtype
    out_dtype = samp_dtype
    samp_item = jnp.dtype(samp_dtype).itemsize
    out_item = jnp.dtype(out_dtype).itemsize

    tb = _choose_batch_tile(B)
    tb_phys_in = _sublane_pad(tb, samp_item)
    unit_cols, reps, grid_n = _choose_n_tiling(N, F, tb_phys_in, samp_item)
    rep_cols = reps * unit_cols
    grid_b = _cdiv(B, tb)

    # --- Fold running-stat normalization into the Linear weights (tiny arrays,
    #     done once in the wrapper; no streamed-tensor prescaling) -------------
    mean = jnp.asarray(running_mean, jnp.float32).reshape(())
    inv_std = 1.0 / jnp.sqrt(jnp.asarray(running_var, jnp.float32).reshape(()) + eps)
    wg_eff = jnp.asarray(w_gamma, jnp.float32).T * inv_std              # (F, F)
    bg_eff = jnp.asarray(b_gamma, jnp.float32).reshape(-1) * inv_std    # (F,)
    wb_eff = jnp.asarray(w_beta, jnp.float32).T - wg_eff * mean         # (F, F)
    bb_eff = jnp.asarray(b_beta, jnp.float32).reshape(-1) - bg_eff * mean

    # Replicate columns only to the 128-lane unit (decoupled from tile width).
    unit = unit_cols // F
    w_cat = jnp.concatenate([jnp.tile(wg_eff, (1, unit)),
                             jnp.tile(wb_eff, (1, unit))], axis=1)      # (F, 2*unit_cols)
    b_cat = jnp.concatenate([jnp.tile(bg_eff, unit),
                             jnp.tile(bb_eff, unit)]).reshape(1, 2 * unit_cols)

    x = jnp.asarray(shape_embedding, jnp.float32)
    s_flat = sample_embeddings.reshape(B, N * F)   # layout-preserving, no copy

    grid = (grid_b, grid_n)
    grid_spec = pltpu.PrefetchScalarGridSpec(
        num_scalar_prefetch=0,
        grid=grid,
        in_specs=[
            pl.BlockSpec((tb, F), lambda b, n: (b, 0)),                # shape emb
            pl.BlockSpec((tb, rep_cols), lambda b, n: (b, n)),         # samples (flat)
            pl.BlockSpec((F, 2 * unit_cols), lambda b, n: (0, 0)),     # folded weights
            pl.BlockSpec((1, 2 * unit_cols), lambda b, n: (0, 0)),     # folded bias
        ],
        out_specs=pl.BlockSpec((tb, rep_cols), lambda b, n: (b, n)),
    )

    # --- VMEM budget (sublane-padded, double-buffered) -----------------------
    tile_in = tb_phys_in * rep_cols * samp_item
    tile_out = _sublane_pad(tb, out_item) * rep_cols * out_item
    x_tile = _sublane_pad(tb, 4) * _round_up(F, 128) * 4
    w_bytes = _round_up(F, 8) * 2 * unit_cols * 4
    bias_bytes = 8 * 2 * unit_cols * 4
    vmem_needed = 2 * (tile_in + tile_out + x_tile + w_bytes + bias_bytes)

    try:
        phys_vmem = int(getattr(pltpu.get_tpu_info(), "vmem_capacity_bytes",
                                64 * 1024 * 1024))
    except Exception:
        phys_vmem = 64 * 1024 * 1024
    vmem_cap = (3 * phys_vmem) // 4            # 48 MiB on v7x, 96 MiB on v5e/v6e
    vmem_limit = int(min(vmem_cap, max(32 * 1024 * 1024, 2 * vmem_needed)))

    out_flat = pl.pallas_call(
        partial(_cbn_kernel, unit_cols=unit_cols, reps=reps),
        out_shape=jax.ShapeDtypeStruct((B, N * F), out_dtype),
        grid_spec=grid_spec,
        compiler_params=pltpu.CompilerParams(
            # No scratch carry (affine recomputed per step) -> both axes are
            # independent; on v7x both TensorCores stream HBM even for B <= tb.
            dimension_semantics=("parallel", "parallel"),
            vmem_limit_bytes=vmem_limit,
        ),
    )(x, s_flat, w_cat, b_cat)

    return out_flat.reshape(B, N, F)


def _reference(shape_embedding, sample_embeddings,
               w_beta, b_beta, w_gamma, b_gamma,
               running_mean, running_var, eps=1e-5):
    beta = shape_embedding @ w_beta.T + b_beta
    gamma = shape_embedding @ w_gamma.T + b_gamma
    normed = (sample_embeddings - running_mean) / jnp.sqrt(running_var + eps)
    return gamma[:, None, :] * normed + beta[:, None, :]


if __name__ == "__main__":
    # Small deterministic problem: batch=2, points=8, f_dim=32 (module default).
    B, N, F_DIM = 2, 8, 32
    key = jax.random.PRNGKey(0)
    k1, k2, k3, k4, k5, k6 = jax.random.split(key, 6)

    shape_embedding = jax.random.normal(k1, (B, F_DIM), dtype=jnp.float32)
    sample_embeddings = jax.random.normal(k2, (B, N, F_DIM), dtype=jnp.float32)

    # Deterministic Linear parameters (nn.Linear(f_dim, f_dim) x2).
    bound = 1.0 / jnp.sqrt(F_DIM)
    w_beta = jax.random.uniform(k3, (F_DIM, F_DIM), jnp.float32, -bound, bound)
    b_beta = jax.random.uniform(k4, (F_DIM,), jnp.float32, -bound, bound)
    w_gamma = jax.random.uniform(k5, (F_DIM, F_DIM), jnp.float32, -bound, bound)
    b_gamma = jax.random.uniform(k6, (F_DIM,), jnp.float32, -bound, bound)

    # Registered buffers as in __init__ (scalar running stats).
    running_mean = jnp.zeros((1,), jnp.float32)
    running_var = jnp.ones((1,), jnp.float32)

    out = batched_cbn_forward(shape_embedding, sample_embeddings,
                              w_beta, b_beta, w_gamma, b_gamma,
                              running_mean, running_var)
    out = jax.block_until_ready(out)

    ref = _reference(shape_embedding, sample_embeddings,
                     w_beta, b_beta, w_gamma, b_gamma,
                     running_mean[0], running_var[0])
    assert out.shape == (B, N, F_DIM)
    max_err = float(jnp.max(jnp.abs(out - ref)))
    assert jnp.allclose(out, ref, atol=2e-5, rtol=2e-5), \
        f"mismatch vs reference (max_err={max_err})"

    print("KERNEL_OK")
</pallas_src>

<mosaic_0001>
module attributes {stable_mosaic.version = 11 : i64} {
  func.func @_cbn_kernel(%arg0: i32, %arg1: i32, %arg2: memref<2x32xf32, #tpu.memory_space<vmem>>, %arg3: memref<2x256xf32, #tpu.memory_space<vmem>>, %arg4: memref<32x256xf32, #tpu.memory_space<vmem>>, %arg5: memref<1x256xf32, #tpu.memory_space<vmem>>, %arg6: memref<2x256xf32, #tpu.memory_space<vmem>>) attributes {dimension_semantics = [#tpu.dimension_semantics<parallel>, #tpu.dimension_semantics<parallel>], iteration_bounds = array<i64: 1, 1>, scalar_prefetch = 0 : i64, scratch_operands = 0 : i64, tpu.core_type = #tpu.core_type<tc>, window_params = [{transform_indices = @transform_0, window_bounds = array<i64: 2, 32>}, {transform_indices = @transform_1, window_bounds = array<i64: 2, 256>}, {pipeline_mode = #tpu.pipeline_mode<synchronous>, transform_indices = @transform_2, window_bounds = array<i64: 32, 256>}, {pipeline_mode = #tpu.pipeline_mode<synchronous>, transform_indices = @transform_3, window_bounds = array<i64: 1, 256>}, {transform_indices = @transform_4, window_bounds = array<i64: 2, 256>}]} {
    %c0 = arith.constant 0 : index
    %c0_0 = arith.constant 0 : index
    %0 = vector.load %arg2[%c0, %c0_0] : memref<2x32xf32, #tpu.memory_space<vmem>>, vector<2x32xf32>
    %c0_1 = arith.constant 0 : index
    %c0_2 = arith.constant 0 : index
    %1 = vector.load %arg4[%c0_1, %c0_2] : memref<32x256xf32, #tpu.memory_space<vmem>>, vector<32x256xf32>
    %cst = arith.constant dense<0.000000e+00> : vector<2x256xf32>
    %2 = tpu.matmul %0, %1, %cst {dimension_numbers = #tpu.dot_dimension_numbers<[1], [0], [0], [1], [0, 0, 1, 1], [], []>} : vector<2x32xf32>, vector<32x256xf32>, vector<2x256xf32> -> vector<2x256xf32>
    %c0_3 = arith.constant 0 : index
    %c0_4 = arith.constant 0 : index
    %3 = vector.load %arg5[%c0_3, %c0_4] : memref<1x256xf32, #tpu.memory_space<vmem>>, vector<1x256xf32>
    %4 = vector.broadcast %3 : vector<1x256xf32> to vector<2x256xf32>
    %5 = arith.addf %2, %4 : vector<2x256xf32>
    %6 = vector.extract_strided_slice %5 {offsets = [0, 0], sizes = [2, 128], strides = [1, 1]} : vector<2x256xf32> to vector<2x128xf32>
    %7 = vector.extract_strided_slice %5 {offsets = [0, 128], sizes = [2, 128], strides = [1, 1]} : vector<2x256xf32> to vector<2x128xf32>
    %c0_5 = arith.constant 0 : index
    %c0_6 = arith.constant 0 : index
    %8 = vector.load %arg3[%c0_5, %c0_6] : memref<2x256xf32, #tpu.memory_space<vmem>>, vector<2x128xf32>
    %9 = arith.mulf %6, %8 : vector<2x128xf32>
    %10 = arith.addf %9, %7 : vector<2x128xf32>
    %c0_7 = arith.constant 0 : index
    %c0_8 = arith.constant 0 : index
    %11 = vector.load %arg6[%c0_7, %c0_8] : memref<2x256xf32, #tpu.memory_space<vmem>>, vector<2x128xf32>
    tpu.vector_store %arg6[%c0_7, %c0_8], %10 {strides = array<i32>} : memref<2x256xf32, #tpu.memory_space<vmem>>, vector<2x128xf32>,
    %c0_9 = arith.constant 0 : index
    %c128 = arith.constant 128 : index
    %12 = vector.load %arg3[%c0_9, %c128] : memref<2x256xf32, #tpu.memory_space<vmem>>, vector<2x128xf32>
    %13 = arith.mulf %6, %12 : vector<2x128xf32>
    %14 = arith.addf %13, %7 : vector<2x128xf32>
    %c0_10 = arith.constant 0 : index
    %c128_11 = arith.constant 128 : index
    %15 = vector.load %arg6[%c0_10, %c128_11] : memref<2x256xf32, #tpu.memory_space<vmem>>, vector<2x128xf32>
    tpu.vector_store %arg6[%c0_10, %c128_11], %14 {strides = array<i32>} : memref<2x256xf32, #tpu.memory_space<vmem>>, vector<2x128xf32>,
    return
  }
  func.func @transform_0(%arg0: i32, %arg1: i32) -> (i32, i32) {
    %c0_i32 = arith.constant 0 : i32
    %c0_i32_0 = arith.constant 0 : i32
    return %arg0, %c0_i32 : i32, i32
  }
  func.func @transform_1(%arg0: i32, %arg1: i32) -> (i32, i32) {
    %c0_i32 = arith.constant 0 : i32
    return %arg0, %arg1 : i32, i32
  }
  func.func @transform_2(%arg0: i32, %arg1: i32) -> (i32, i32) {
    %c0_i32 = arith.constant 0 : i32
    %c0_i32_0 = arith.constant 0 : i32
    %c0_i32_1 = arith.constant 0 : i32
    return %c0_i32, %c0_i32_0 : i32, i32
  }
  func.func @transform_3(%arg0: i32, %arg1: i32) -> (i32, i32) {
    %c0_i32 = arith.constant 0 : i32
    %c0_i32_0 = arith.constant 0 : i32
    %c0_i32_1 = arith.constant 0 : i32
    return %c0_i32, %c0_i32_0 : i32, i32
  }
  func.func @transform_4(%arg0: i32, %arg1: i32) -> (i32, i32) {
    %c0_i32 = arith.constant 0 : i32
    return %arg0, %arg1 : i32, i32
  }
}

</mosaic_0001>

<llo_original>
// kernel: tpu_custom_call.1
$region0: #{tpu_custom_call.1}
  #allocation0 [shape = 'u32[]', space=smem, size = 0x4, offset = 0x4, fixed_abs, tag = 'smem constant byte address 0x4 - core index']
  #allocation1 [shape = 'u32[144,128]{1,0:T(1,128)}', space=vmem, size = 0x12000, scoped, tag = 'internal scratch']
  %s0 = inlined_call_operand.hbm [shape: f32[2,32], index: 0, kind: input, shape index: {}]
  %s1 = inlined_call_operand.hbm [shape: f32[2,256], index: 1, kind: input, shape index: {}]
  %s2 = inlined_call_operand.hbm [shape: f32[32,256], index: 2, kind: input, shape index: {}]
  %s3 = inlined_call_operand.vmem [shape: f32[1,256], index: 3, kind: input, shape index: {}]
  %s4 = inlined_call_operand.hbm [shape: f32[2,256], index: 4, kind: output, shape index: {}]
  %s5 = sld [smem:[#allocation0]]
  $region38: #{tpu_custom_call.1} parent=0
    _
  %s7 = ssub.s32 1, %s5
  %s8 = scalar_select 0, %s7, %s5
  $region1: #{tpu_custom_call.1} parent=0
    #allocation2 [shape = 'u8[1024]{0}', space=vmem, size = 0x400, scoped, tag = 'input window, operand 0, single buffered']
    #allocation3 [shape = 's32[1]{0}', space=sflag, size = 0x4, scoped, tag = 'scoped memory for tpu_custom_call.1']
    #allocation4 [shape = 's32[1]{0}', space=sflag, size = 0x4, scoped, tag = 'scoped memory for tpu_custom_call.1']
    #allocation5 [shape = 'u8[2048]{0}', space=vmem, size = 0x800, scoped, tag = 'input window, operand 1, single buffered']
    #allocation6 [shape = 's32[1]{0}', space=sflag, size = 0x4, scoped, tag = 'scoped memory for tpu_custom_call.1']
    #allocation7 [shape = 'u8[32768]{0}', space=vmem, size = 0x8000, scoped, tag = 'input window, operand 2, single buffered']
    #allocation8 [shape = 'u8[2048]{0}', space=vmem, size = 0x800, scoped, tag = 'output window, operand 0, single buffered']
    %9 = vsyncpa [#allocation3], 0
    %10 = vsyncpa [#allocation6], 0
    %11 = vsyncpa [#allocation4], 0
    // Predicated region
    $region2: #{tpu_custom_call.1} parent=1 // pred_check
      _
    $region3: #{tpu_custom_call.1} parent=1 // pred_check_branch
      %13 = sbr.rel (0) target = $region5
    $region4: #{tpu_custom_call.1} parent=1 // pred_region
      %s15 = ssub.s32 32, 32
      %16 = vsyncadd [#allocation3], %s15
      %s18 = sshll.u32 [#allocation2], 4
      %s19 = int_to_ptr.vmem [resolvable:$true] %s18
      %21 = dma.hbm_to_vmem [thread:$0]  %s0, 32, %s19, [#allocation3]
    $region5: #{tpu_custom_call.1} parent=1 // pred_fallthru
      _
    // Predicated region
    $region6: #{tpu_custom_call.1} parent=1 // pred_check
      _
    $region7: #{tpu_custom_call.1} parent=1 // pred_check_branch
      %23 = sbr.rel (0) target = $region9
    $region8: #{tpu_custom_call.1} parent=1 // pred_region
      %s25 = ssub.s32 64, 64
      %26 = vsyncadd [#allocation6], %s25
      %s28 = sshll.u32 [#allocation5], 4
      %s29 = int_to_ptr.vmem [resolvable:$true] %s28
      %31 = dma.hbm_to_vmem [thread:$0]  %s1, 64, %s29, [#allocation6]
    $region9: #{tpu_custom_call.1} parent=1 // pred_fallthru
      _
    // Predicated region
    $region10: #{tpu_custom_call.1} parent=1 // pred_check
      _
    $region11: #{tpu_custom_call.1} parent=1 // pred_check_branch
      %33 = sbr.rel (0) target = $region13
    $region12: #{tpu_custom_call.1} parent=1 // pred_region
      %s35 = ssub.s32 1024, 1024
      %36 = vsyncadd [#allocation6], %s35
      %s37 = sshll.u32 [#allocation7], 4
      %s38 = int_to_ptr.vmem [resolvable:$true] %s37
      %43 = dma.hbm_to_vmem [thread:$0]  %s2, 1024, %s38, [#allocation6], 256, 256, 16
    $region13: #{tpu_custom_call.1} parent=1 // pred_fallthru
      _
    // Predicated region
    $region14: #{tpu_custom_call.1} parent=1 // pred_check
      _
    $region15: #{tpu_custom_call.1} parent=1 // pred_check_branch
      %45 = sbr.rel (0) target = $region17
    $region16: #{tpu_custom_call.1} parent=1 // pred_region
      _
    $region17: #{tpu_custom_call.1} parent=1 // pred_fallthru
      _
    // Predicated region
    $region18: #{tpu_custom_call.1} parent=1 // pred_check
      _
    $region19: #{tpu_custom_call.1} parent=1 // pred_check_branch
      %47 = sbr.rel (0) target = $region21
    $region20: #{tpu_custom_call.1} parent=1 // pred_region
      %48 = dma.done [#allocation3], 32
    $region21: #{tpu_custom_call.1} parent=1 // pred_fallthru
      _
    // Predicated region
    $region22: #{tpu_custom_call.1} parent=1 // pred_check
      _
    $region23: #{tpu_custom_call.1} parent=1 // pred_check_branch
      %50 = sbr.rel (0) target = $region25
    $region24: #{tpu_custom_call.1} parent=1 // pred_region
      %51 = dma.done [#allocation6], 64
    $region25: #{tpu_custom_call.1} parent=1 // pred_fallthru
      _
    // Predicated region
    $region26: #{tpu_custom_call.1} parent=1 // pred_check
      _
    $region27: #{tpu_custom_call.1} parent=1 // pred_check_branch
      %53 = sbr.rel (0) target = $region29
    $region28: #{tpu_custom_call.1} parent=1 // pred_region
      %54 = dma.done [#allocation6], 1024
    $region29: #{tpu_custom_call.1} parent=1 // pred_fallthru
      _
    %v55 = vld [vmem:[#allocation2] sm:$0x3]
    %v56 = vld [vmem:[#allocation7] sm:$0xff]
    %v57 = vld [vmem:[#allocation7 + $0x8] sm:$0xff]
    %v58 = vld [vmem:[#allocation7 + $0x10] sm:$0xff]
    %v59 = vld [vmem:[#allocation7 + $0x18] sm:$0xff]
    %v60 = vld [vmem:[#allocation7 + $0x20] sm:$0xff]
    %v61 = vld [vmem:[#allocation7 + $0x28] sm:$0xff]
    %v62 = vld [vmem:[#allocation7 + $0x30] sm:$0xff]
    %v63 = vld [vmem:[#allocation7 + $0x38] sm:$0xff]
    %v64 = vld [vmem:[%s3] sm:$0x3]
    %v66 = vlaneseq
    %v67 = vshrl.u32 %v66, 7
    %v68 = vsub.s32 0, %v67
    %v69 = vrot.slane %v64, %v68
    %v70 = vlaneseq
    %v71 = vshrl.u32 %v70, 7
    %v72 = vsub.s32 1, %v71
    %v73 = vrot.slane %v64, %v72
    %vm76 = vcmask 261120
    %v78 = vsel %vm76, %v55, 0
    %80 = vmatprep.subr.mxu0 %v57
    %81 = vmatpush1.msra.mxu0 %v56
    %82 = vmatprep.subr.mxu0 %v59
    %83 = vmatpush1.msra.mxu0 %v58
    %84 = vmatprep.subr.mxu0 %v61
    %85 = vmatpush1.msra.mxu0 %v60
    %86 = vmatprep.subr.mxu0 %v63
    %87 = vmatpush1.msra.mxu0 %v62
    %88 = vmatprep.subr.mxu0 0.0
    %89 = vmatpush1.msra.mxu0 0.0
    %90 = vmatprep.subr.mxu0 0.0
    %91 = vmatpush1.msra.mxu0 0.0
    %92 = vmatprep.subr.mxu0 0.0
    %93 = vmatpush1.msra.mxu0 0.0
    %94 = vmatprep.subr.mxu0 0.0
    %95 = vmatpush1.msra.mxu0 0.0
    %96 = vmatprep.subr.mxu0 0.0
    %97 = vmatpush1.msra.mxu0 0.0
    %98 = vmatprep.subr.mxu0 0.0
    %99 = vmatpush1.msra.mxu0 0.0
    %100 = vmatprep.subr.mxu0 0.0
    %101 = vmatpush1.msra.mxu0 0.0
    %102 = vmatprep.subr.mxu0 0.0
    %103 = vmatpush1.msra.mxu0 0.0
    %104 = vmatprep.subr.mxu0 0.0
    %105 = vmatpush1.msra.mxu0 0.0
    %106 = vmatprep.subr.mxu0 0.0
    %107 = vmatpush1.msra.mxu0 0.0
    %108 = vmatprep.subr.mxu0 0.0
    %109 = vmatpush1.msra.mxu0 0.0
    %110 = vmatprep.subr.mxu0 0.0
    %111 = vmatpush1.msra.mxu0 0.0
    %112 = vmatprep.subr.mxu0 0.0
    %113 = vmatpush1.msra.mxu0 0.0
    %114 = vmatprep.subr.mxu0 0.0
    %115 = vmatpush1.msra.mxu0 0.0
    %116 = vmatprep.subr.mxu0 0.0
    %117 = vmatpush1.msra.mxu0 0.0
    %118 = vmatprep.subr.mxu0 0.0
    %119 = vmatpush1.msra.mxu0 0.0
    %120 = vmatprep.subr.mxu0 0.0
    %121 = vmatpush1.msra.mxu0 0.0
    %122 = vmatprep.subr.mxu0 0.0
    %123 = vmatpush1.msra.mxu0 0.0
    %124 = vmatprep.subr.mxu0 0.0
    %125 = vmatpush1.msra.mxu0 0.0
    %126 = vmatprep.subr.mxu0 0.0
    %127 = vmatpush1.msra.mxu0 0.0
    %128 = vmatprep.subr.mxu0 0.0
    %129 = vmatpush1.msra.mxu0 0.0
    %130 = vmatprep.subr.mxu0 0.0
    %131 = vmatpush1.msra.mxu0 0.0
    %132 = vmatprep.subr.mxu0 0.0
    %133 = vmatpush1.msra.mxu0 0.0
    %134 = vmatprep.subr.mxu0 0.0
    %135 = vmatpush1.msra.mxu0 0.0
    %136 = vmatprep.subr.mxu0 0.0
    %137 = vmatpush1.msra.mxu0 0.0
    %138 = vmatprep.subr.mxu0 0.0
    %139 = vmatpush1.msra.mxu0 0.0
    %140 = vmatprep.subr.mxu0 0.0
    %141 = vmatpush1.msra.mxu0 0.0
    %142 = vmatprep.subr.mxu0 0.0
    %143 = vmatpush1.msra.mxu0 0.0
    %144 = vmatprep.mubr.f32.mxu0 0.0
    %145 = vmatmul.mubr.f32.gmra.mrb[0].mxu0 %v78
    %v146 = vpop.f32.mrb[0].mxu0
    %v147 = vadd.f32 %v69, %v146
    %v148 = vpop.f32.mrb[0].mxu0
    %v149 = vadd.f32 %v73, %v148
    %150 = vdwg.mxu0
    %v151 = vld [vmem:[#allocation5] sm:$0x3]
    %v152 = vmul.f32 %v147, %v151
    %v153 = vadd.f32 %v152, %v149
    %154 = vst [vmem:[#allocation8] sm:$0x3] %v153
    %v155 = vld [vmem:[#allocation5 + $0x2] sm:$0x3]
    %v156 = vmul.f32 %v147, %v155
    %v157 = vadd.f32 %v156, %v149
    %158 = vst [vmem:[#allocation8 + $0x2] sm:$0x3] %v157
    // Predicated region
    $region30: #{tpu_custom_call.1} parent=1 // pred_check
      _
    $region31: #{tpu_custom_call.1} parent=1 // pred_check_branch
      %160 = sbr.rel (0) target = $region33
    $region32: #{tpu_custom_call.1} parent=1 // pred_region
      %s162 = ssub.s32 64, 64
      %163 = vsyncadd [#allocation4], %s162
      %s165 = sshll.u32 [#allocation8], 4
      %s166 = int_to_ptr.vmem [resolvable:$true] %s165
      %168 = dma.vmem_to_hbm [thread:$0]  %s166, 64, %s4, [#allocation4]
    $region33: #{tpu_custom_call.1} parent=1 // pred_fallthru
      _
    // Predicated region
    $region34: #{tpu_custom_call.1} parent=1 // pred_check
      _
    $region35: #{tpu_custom_call.1} parent=1 // pred_check_branch
      %170 = sbr.rel (0) target = $region37
    $region36: #{tpu_custom_call.1} parent=1 // pred_region
      %171 = dma.done [#allocation4], 64
    $region37: #{tpu_custom_call.1} parent=1 // pred_fallthru
      _
    %172 = vsyncpa [#allocation3], 1
    %173 = vsyncpa [#allocation6], 1
    %174 = vsyncpa [#allocation4], 1

</llo_original>
